<compile_context>
chip_gen: v5e
topology: v5e:2x2
jax: 0.10.0
libtpu: 0.0.40
codegen_flags: <defaults>
</compile_context>

<pallas_src>
import jax
import jax.numpy as jnp
from jax import lax
from jax.experimental import pallas as pl
from jax.experimental.pallas import tpu as pltpu

LANE = 128
SUBLANE = 8


def _round_up(n: int, m: int) -> int:
    return ((n + m - 1) // m) * m


def _make_mse_partial_kernel(weight: float, tr: int, rows: int,
                             steps_per_split: int):
    """Accumulate sum((x*w - c)^2) into a resident (8, 128) partial per split."""
    w = float(weight)                 # Python literal -> no captured constant
    sub_tiles = tr // SUBLANE

    def kernel(x_ref, c_ref, part_ref):
        i = pl.program_id(0)
        j = pl.program_id(1)

        @pl.when(j == 0)
        def _init():
            part_ref[...] = jnp.zeros_like(part_ref)

        block_idx = i * steps_per_split + j
        start_row = block_idx * tr

        def _accumulate(sq):
            # Collapse only the row axis (cheap VPU adds); keep the (8, 128)
            # vreg-native shape so no XLU cross-lane work happens per step.
            part_ref[...] += sq.reshape(sub_tiles, SUBLANE, LANE).sum(axis=0)

        # Hot path: block fully inside the array -> no masking work at all.
        @pl.when(start_row + tr <= rows)
        def _full():
            d = x_ref[...] * w - c_ref[...]
            _accumulate(d * d)

        # Ragged boundary block: mask out-of-range rows BEFORE accumulation so
        # garbage/NaN from the OOB region cannot leak into the sum.
        @pl.when(jnp.logical_and(start_row < rows, start_row + tr > rows))
        def _partial():
            d = x_ref[...] * w - c_ref[...]
            sq = d * d
            row = start_row + lax.broadcasted_iota(jnp.int32, (tr, LANE), 0)
            _accumulate(jnp.where(row < rows, sq, 0.0))

        # block_idx beyond the real block count is a duplicate step produced by
        # the clamped index_map (at most num_splits-1 of them); both branches
        # above are false there, so it contributes nothing.

    return kernel


def content_loss_forward(x_nchw, content_scaled_nchw, weight,
                         *, tile_rows: int = 8192, num_splits: int = 2,
                         fastpath_elems: int = SUBLANE * LANE):
    """Returns (input_passthrough, loss) matching contentLoss.forward.

    x_nchw:               [N, C, H, W] input feature map
    content_scaled_nchw:  [N, C, H, W], equals content * weight
    """
    assert x_nchw.shape == content_scaled_nchw.shape
    total = int(x_nchw.size)
    w = float(weight)

    # ---- Fast path: tiny feature maps -> fused XLA expression is cheaper. ----
    if total < fastpath_elems:
        x32 = x_nchw.astype(jnp.float32)
        c32 = content_scaled_nchw.astype(jnp.float32)
        loss = jnp.mean((x32 * w - c32) ** 2)
        return x_nchw, loss

    # ---- Flatten; pad only the lane remainder (usually zero -> free bitcast). ----
    x_flat = x_nchw.reshape(-1).astype(jnp.float32)
    c_flat = content_scaled_nchw.reshape(-1).astype(jnp.float32)
    pad = (-total) % LANE
    if pad:
        # TODO(synk): a fully copy-free path for lane-misaligned totals would
        # need manual HBM DMAs; pad <= 127 zeros instead (rare case).
        x_flat = jnp.pad(x_flat, (0, pad))
        c_flat = jnp.pad(c_flat, (0, pad))
    rows = (total + pad) // LANE
    x2 = x_flat.reshape(rows, LANE)
    c2 = c_flat.reshape(rows, LANE)

    # ---- Tiling: large lane-dense tiles, (8, 128) granularity. ----
    tr = _round_up(min(int(tile_rows), _round_up(rows, SUBLANE)), SUBLANE)
    blocks_total = -(-rows // tr)                      # ceil
    splits = max(1, min(int(num_splits), blocks_total))
    spb = -(-blocks_total // splits)                   # steps per split (ceil)

    def in_index_map(i, j):
        # Clamp so DMAs never start past the end of the array; duplicate steps
        # are skipped inside the kernel.
        return (jnp.minimum(i * spb + j, blocks_total - 1), 0)

    # ---- VMEM budget: 2 inputs x 2 pipeline buffers x tile + out + headroom. ----
    tile_bytes = tr * LANE * 4
    vmem_need = 2 * 2 * tile_bytes + splits * SUBLANE * LANE * 4 + (2 << 20)
    vmem_limit = min(max(vmem_need, 16 << 20), 48 << 20)   # v7x-safe (64 MiB/TC)

    kernel = _make_mse_partial_kernel(w, tr, rows, spb)

    partials = pl.pallas_call(
        kernel,
        out_shape=jax.ShapeDtypeStruct((splits, SUBLANE, LANE), jnp.float32),
        grid_spec=pltpu.PrefetchScalarGridSpec(
            num_scalar_prefetch=0,
            grid=(splits, spb),                        # (parallel, reduce)
            in_specs=[
                pl.BlockSpec((tr, LANE), in_index_map),
                pl.BlockSpec((tr, LANE), in_index_map),
            ],
            # Same block across j -> the output stays resident in VMEM and
            # serves as the accumulator; leading dim squeezed -> (8, 128).
            out_specs=pl.BlockSpec((None, SUBLANE, LANE), lambda i, j: (i, 0, 0)),
        ),
        compiler_params=pltpu.CompilerParams(
            dimension_semantics=("parallel", "arbitrary"),
            vmem_limit_bytes=int(vmem_limit),
        ),
        cost_estimate=pl.CostEstimate(
            flops=4 * rows * LANE,
            transcendentals=0,
            bytes_accessed=2 * rows * LANE * 4 + splits * SUBLANE * LANE * 4,
        ),
    )(x2, c2)

    # Tiny epilogue: final cross-lane/sublane reduce + mean normalization.
    # (Sequential f32 accumulation is fine for a loss scalar.)
    loss = jnp.sum(partials) / jnp.float32(total)

    # forward() returns the input unchanged (identity); loss is module state.
    return x_nchw, loss


if __name__ == "__main__":
    key = jax.random.PRNGKey(0)
    weight = 0.75

    def run_case(case_key, shape, **kw):
        kc, kx = jax.random.split(case_key)
        content = jax.random.normal(kc, shape, dtype=jnp.float32)
        x = jax.random.normal(kx, shape, dtype=jnp.float32)
        content_scaled = content * weight          # module __init__
        out, loss = content_loss_forward(x, content_scaled, weight, **kw)
        out = jax.block_until_ready(out)
        loss = jax.block_until_ready(loss)
        ref = jnp.mean((x * weight - content_scaled) ** 2)
        assert jnp.allclose(loss, ref, rtol=1e-5, atol=1e-6), (shape, loss, ref)
        assert jnp.array_equal(out, x)             # forward returns input as-is

    k1, k2, k3, k4 = jax.random.split(key, 4)

    # 1) Primary small NCHW feature map (single full block through Pallas).
    run_case(k1, (2, 4, 16, 16))
    # 2) Multi-step reduction + two parallel splits (resident accumulator).
    run_case(k2, (2, 8, 32, 32), tile_rows=32)
    # 3) Ragged: 3 real blocks over 2 splits -> one clamped duplicate step is
    #    skipped in-kernel, plus a masked partial boundary block.
    run_case(k3, (2, 5, 16, 16), tile_rows=8)
    # 4) Lane-misaligned tiny shape -> jnp fast path.
    run_case(k4, (1, 3, 13, 7))

    print("KERNEL_OK")
</pallas_src>

<mosaic_0001>
module attributes {stable_mosaic.version = 11 : i64} {
  func.func @kernel(%arg0: i32, %arg1: i32, %arg2: memref<16x128xf32, #tpu.memory_space<vmem>>, %arg3: memref<16x128xf32, #tpu.memory_space<vmem>>, %arg4: memref<1x8x128xf32, #tpu.memory_space<vmem>>) attributes {dimension_semantics = [#tpu.dimension_semantics<parallel>, #tpu.dimension_semantics<arbitrary>], iteration_bounds = array<i64: 1, 1>, scalar_prefetch = 0 : i64, scratch_operands = 0 : i64, tpu.core_type = #tpu.core_type<tc>, window_params = [{transform_indices = @transform_0, window_bounds = array<i64: 16, 128>}, {transform_indices = @transform_1, window_bounds = array<i64: 16, 128>}, {transform_indices = @transform_2, window_bounds = array<i64: 1, 8, 128>}]} {
    %c0_i32 = arith.constant 0 : i32
    %0 = arith.cmpi eq, %arg1, %c0_i32 : i32
    %1 = arith.extui %0 : i1 to i32
    %c0_i32_0 = arith.constant 0 : i32
    %2 = arith.cmpi ne, %1, %c0_i32_0 : i32
    scf.if %2 {
      %cst = arith.constant 0.000000e+00 : f32
      %16 = vector.broadcast %cst : f32 to vector<8x128xf32>
      %c0 = arith.constant 0 : index
      %c0_8 = arith.constant 0 : index
      %c0_9 = arith.constant 0 : index
      %17 = vector.load %arg4[%c0, %c0_8, %c0_9] : memref<1x8x128xf32, #tpu.memory_space<vmem>>, vector<1x8x128xf32>
      %18 = vector.shape_cast %17 : vector<1x8x128xf32> to vector<8x128xf32>
      %19 = vector.shape_cast %16 : vector<8x128xf32> to vector<1x8x128xf32>
      tpu.vector_store %arg4[%c0, %c0_8, %c0_9], %19 {strides = array<i32>} : memref<1x8x128xf32, #tpu.memory_space<vmem>>, vector<1x8x128xf32>,
    } else {
    }
    %c1_i32 = arith.constant 1 : i32
    %3 = arith.muli %arg0, %c1_i32 : i32
    %4 = arith.addi %3, %arg1 : i32
    %c16_i32 = arith.constant 16 : i32
    %5 = arith.muli %4, %c16_i32 : i32
    %c16_i32_1 = arith.constant 16 : i32
    %6 = arith.addi %5, %c16_i32_1 : i32
    %c16_i32_2 = arith.constant 16 : i32
    %7 = arith.cmpi sle, %6, %c16_i32_2 : i32
    %8 = arith.extui %7 : i1 to i32
    %c0_i32_3 = arith.constant 0 : i32
    %9 = arith.cmpi ne, %8, %c0_i32_3 : i32
    scf.if %9 {
      %c0 = arith.constant 0 : index
      %c0_8 = arith.constant 0 : index
      %16 = vector.load %arg2[%c0, %c0_8] : memref<16x128xf32, #tpu.memory_space<vmem>>, vector<16x128xf32>
      %cst = arith.constant 7.500000e-01 : f32
      %17 = vector.broadcast %cst : f32 to vector<16x128xf32>
      %18 = arith.mulf %16, %17 : vector<16x128xf32>
      %c0_9 = arith.constant 0 : index
      %c0_10 = arith.constant 0 : index
      %19 = vector.load %arg3[%c0_9, %c0_10] : memref<16x128xf32, #tpu.memory_space<vmem>>, vector<16x128xf32>
      %20 = arith.subf %18, %19 : vector<16x128xf32>
      %21 = arith.mulf %20, %20 : vector<16x128xf32>
      %c0_11 = arith.constant 0 : index
      %c0_12 = arith.constant 0 : index
      %c0_13 = arith.constant 0 : index
      %22 = vector.load %arg4[%c0_11, %c0_12, %c0_13] : memref<1x8x128xf32, #tpu.memory_space<vmem>>, vector<1x8x128xf32>
      %23 = vector.shape_cast %22 : vector<1x8x128xf32> to vector<8x128xf32>
      %24 = vector.shape_cast %21 : vector<16x128xf32> to vector<2x8x128xf32>
      %cst_14 = arith.constant dense<0.000000e+00> : vector<8x128xf32>
      %25 = vector.multi_reduction <add>, %24, %cst_14 [0] : vector<2x8x128xf32> to vector<8x128xf32>
      %26 = arith.addf %23, %25 : vector<8x128xf32>
      %c0_15 = arith.constant 0 : index
      %c0_16 = arith.constant 0 : index
      %c0_17 = arith.constant 0 : index
      %27 = vector.load %arg4[%c0_15, %c0_16, %c0_17] : memref<1x8x128xf32, #tpu.memory_space<vmem>>, vector<1x8x128xf32>
      %28 = vector.shape_cast %27 : vector<1x8x128xf32> to vector<8x128xf32>
      %29 = vector.shape_cast %26 : vector<8x128xf32> to vector<1x8x128xf32>
      tpu.vector_store %arg4[%c0_15, %c0_16, %c0_17], %29 {strides = array<i32>} : memref<1x8x128xf32, #tpu.memory_space<vmem>>, vector<1x8x128xf32>,
    } else {
    }
    %c16_i32_4 = arith.constant 16 : i32
    %10 = arith.cmpi slt, %5, %c16_i32_4 : i32
    %c16_i32_5 = arith.constant 16 : i32
    %11 = arith.addi %5, %c16_i32_5 : i32
    %c16_i32_6 = arith.constant 16 : i32
    %12 = arith.cmpi sgt, %11, %c16_i32_6 : i32
    %13 = arith.andi %10, %12 : i1
    %14 = arith.extui %13 : i1 to i32
    %c0_i32_7 = arith.constant 0 : i32
    %15 = arith.cmpi ne, %14, %c0_i32_7 : i32
    scf.if %15 {
      %c0 = arith.constant 0 : index
      %c0_8 = arith.constant 0 : index
      %16 = vector.load %arg2[%c0, %c0_8] : memref<16x128xf32, #tpu.memory_space<vmem>>, vector<16x128xf32>
      %cst = arith.constant 7.500000e-01 : f32
      %17 = vector.broadcast %cst : f32 to vector<16x128xf32>
      %18 = arith.mulf %16, %17 : vector<16x128xf32>
      %c0_9 = arith.constant 0 : index
      %c0_10 = arith.constant 0 : index
      %19 = vector.load %arg3[%c0_9, %c0_10] : memref<16x128xf32, #tpu.memory_space<vmem>>, vector<16x128xf32>
      %20 = arith.subf %18, %19 : vector<16x128xf32>
      %21 = arith.mulf %20, %20 : vector<16x128xf32>
      %22 = tpu.iota {dimensions = array<i32: 0>} : vector<16x128xi32>
      %23 = vector.broadcast %5 : i32 to vector<16x128xi32>
      %24 = arith.addi %23, %22 : vector<16x128xi32>
      %c16_i32_11 = arith.constant 16 : i32
      %25 = vector.broadcast %c16_i32_11 : i32 to vector<16x128xi32>
      %26 = arith.cmpi slt, %24, %25 : vector<16x128xi32>
      %cst_12 = arith.constant 0.000000e+00 : f32
      %27 = vector.broadcast %cst_12 : f32 to vector<16x128xf32>
      %28 = arith.select %26, %21, %27 : vector<16x128xi1>, vector<16x128xf32>
      %c0_13 = arith.constant 0 : index
      %c0_14 = arith.constant 0 : index
      %c0_15 = arith.constant 0 : index
      %29 = vector.load %arg4[%c0_13, %c0_14, %c0_15] : memref<1x8x128xf32, #tpu.memory_space<vmem>>, vector<1x8x128xf32>
      %30 = vector.shape_cast %29 : vector<1x8x128xf32> to vector<8x128xf32>
      %31 = vector.shape_cast %28 : vector<16x128xf32> to vector<2x8x128xf32>
      %cst_16 = arith.constant dense<0.000000e+00> : vector<8x128xf32>
      %32 = vector.multi_reduction <add>, %31, %cst_16 [0] : vector<2x8x128xf32> to vector<8x128xf32>
      %33 = arith.addf %30, %32 : vector<8x128xf32>
      %c0_17 = arith.constant 0 : index
      %c0_18 = arith.constant 0 : index
      %c0_19 = arith.constant 0 : index
      %34 = vector.load %arg4[%c0_17, %c0_18, %c0_19] : memref<1x8x128xf32, #tpu.memory_space<vmem>>, vector<1x8x128xf32>
      %35 = vector.shape_cast %34 : vector<1x8x128xf32> to vector<8x128xf32>
      %36 = vector.shape_cast %33 : vector<8x128xf32> to vector<1x8x128xf32>
      tpu.vector_store %arg4[%c0_17, %c0_18, %c0_19], %36 {strides = array<i32>} : memref<1x8x128xf32, #tpu.memory_space<vmem>>, vector<1x8x128xf32>,
    } else {
    }
    return
  }
  func.func @transform_0(%arg0: i32, %arg1: i32) -> (i32, i32) {
    %c1_i32 = arith.constant 1 : i32
    %0 = arith.muli %arg0, %c1_i32 : i32
    %1 = arith.addi %0, %arg1 : i32
    %c0_i32 = arith.constant 0 : i32
    %2 = arith.minsi %1, %c0_i32 : i32
    %c0_i32_0 = arith.constant 0 : i32
    %c0_i32_1 = arith.constant 0 : i32
    return %2, %c0_i32_0 : i32, i32
  }
  func.func @transform_1(%arg0: i32, %arg1: i32) -> (i32, i32) {
    %c1_i32 = arith.constant 1 : i32
    %0 = arith.muli %arg0, %c1_i32 : i32
    %1 = arith.addi %0, %arg1 : i32
    %c0_i32 = arith.constant 0 : i32
    %2 = arith.minsi %1, %c0_i32 : i32
    %c0_i32_0 = arith.constant 0 : i32
    %c0_i32_1 = arith.constant 0 : i32
    return %2, %c0_i32_0 : i32, i32
  }
  func.func @transform_2(%arg0: i32, %arg1: i32) -> (i32, i32, i32) {
    %c0_i32 = arith.constant 0 : i32
    %c0_i32_0 = arith.constant 0 : i32
    %c0_i32_1 = arith.constant 0 : i32
    return %arg0, %c0_i32, %c0_i32_0 : i32, i32, i32
  }
}

</mosaic_0001>

<llo_original>
// kernel: tpu_custom_call.1
$region0: #{tpu_custom_call.1}
  #allocation0 [shape = 'u32[]', space=smem, size = 0x4, offset = 0x4, fixed_abs, tag = 'smem constant byte address 0x4 - core index']
  #allocation1 [shape = 'u32[72,128]{1,0:T(1,128)}', space=vmem, size = 0x9000, scoped, tag = 'internal scratch']
  %s0 = inlined_call_operand.hbm [shape: f32[16,128], index: 0, kind: input, shape index: {}]
  %s1 = inlined_call_operand.hbm [shape: f32[16,128], index: 1, kind: input, shape index: {}]
  %s2 = inlined_call_operand.hbm [shape: f32[1,8,128], index: 2, kind: output, shape index: {}]
  %s3 = sld [smem:[#allocation0]]
  $region38: #{tpu_custom_call.1} parent=0
    _
  %s5 = ssub.s32 1, %s3
  %s6 = scalar_select 0, %s5, %s3
  $region1: #{tpu_custom_call.1} parent=0
    #allocation2 [shape = 'u8[8192]{0}', space=vmem, size = 0x2000, scoped, tag = 'input window, operand 0, single buffered']
    #allocation3 [shape = 's32[1]{0}', space=sflag, size = 0x4, scoped, tag = 'scoped memory for tpu_custom_call.1']
    #allocation4 [shape = 's32[1]{0}', space=sflag, size = 0x4, scoped, tag = 'scoped memory for tpu_custom_call.1']
    #allocation5 [shape = 'u8[8192]{0}', space=vmem, size = 0x2000, scoped, tag = 'input window, operand 1, single buffered']
    #allocation6 [shape = 's32[1]{0}', space=sflag, size = 0x4, scoped, tag = 'scoped memory for tpu_custom_call.1']
    #allocation7 [shape = 'u8[4096]{0}', space=vmem, size = 0x1000, scoped, tag = 'output window, operand 0, single buffered']
    %7 = vsyncpa [#allocation3], 0
    %8 = vsyncpa [#allocation6], 0
    %9 = vsyncpa [#allocation4], 0
    // Predicated region
    $region2: #{tpu_custom_call.1} parent=1 // pred_check
      _
    $region3: #{tpu_custom_call.1} parent=1 // pred_check_branch
      %11 = sbr.rel (0) target = $region5
    $region4: #{tpu_custom_call.1} parent=1 // pred_region
      %s12 = sadd.s32 0, 0
      %p13 = scmp.lt.s32.totalorder %s12, 0
      %s14 = scalar_select %p13, %s12, 0
      %s15 = smul.u32 2, %s14
      %17 = vsyncadd [#allocation3], 0
      %s18 = smul.addr %s15, 8
      %s19 = scalar_lea.hbm %s0, %s18
      %s20 = sshll.u32 %s19, 4
      %s21 = int_to_ptr.hbm [resolvable:$true] %s20
      %s22 = sshll.u32 [#allocation2], 4
      %s23 = int_to_ptr.vmem [resolvable:$true] %s22
      %28 = dma.hbm_to_vmem [thread:$0]  %s21, 256, %s23, [#allocation3], 128, 128, 8
    $region5: #{tpu_custom_call.1} parent=1 // pred_fallthru
      _
    // Predicated region
    $region6: #{tpu_custom_call.1} parent=1 // pred_check
      _
    $region7: #{tpu_custom_call.1} parent=1 // pred_check_branch
      %30 = sbr.rel (0) target = $region9
    $region8: #{tpu_custom_call.1} parent=1 // pred_region
      %s31 = sadd.s32 0, 0
      %p32 = scmp.lt.s32.totalorder %s31, 0
      %s33 = scalar_select %p32, %s31, 0
      %s34 = smul.u32 2, %s33
      %36 = vsyncadd [#allocation6], 0
      %s37 = smul.addr %s34, 8
      %s38 = scalar_lea.hbm %s1, %s37
      %s39 = sshll.u32 %s38, 4
      %s40 = int_to_ptr.hbm [resolvable:$true] %s39
      %s41 = sshll.u32 [#allocation5], 4
      %s42 = int_to_ptr.vmem [resolvable:$true] %s41
      %47 = dma.hbm_to_vmem [thread:$0]  %s40, 256, %s42, [#allocation6], 128, 128, 8
    $region9: #{tpu_custom_call.1} parent=1 // pred_fallthru
      _
    // Predicated region
    $region10: #{tpu_custom_call.1} parent=1 // pred_check
      _
    $region11: #{tpu_custom_call.1} parent=1 // pred_check_branch
      %49 = sbr.rel (0) target = $region13
    $region12: #{tpu_custom_call.1} parent=1 // pred_region
      %51 = dma.done [#allocation3], 256
    $region13: #{tpu_custom_call.1} parent=1 // pred_fallthru
      _
    // Predicated region
    $region14: #{tpu_custom_call.1} parent=1 // pred_check
      _
    $region15: #{tpu_custom_call.1} parent=1 // pred_check_branch
      %53 = sbr.rel (0) target = $region17
    $region16: #{tpu_custom_call.1} parent=1 // pred_region
      %55 = dma.done [#allocation6], 256
    $region17: #{tpu_custom_call.1} parent=1 // pred_fallthru
      _
    %s56 = sadd.s32 0, 0
    %p57 = scmp.lt.s32.totalorder %s56, 0
    %s58 = scalar_select %p57, %s56, 0
    %s59 = smul.u32 2, %s58
    %s60 = sadd.s32 0, 0
    %p61 = scmp.lt.s32.totalorder %s60, 0
    %s62 = scalar_select %p61, %s60, 0
    %s63 = smul.u32 2, %s62
    %p64 = scmp.eq.s32.totalorder 0, 0
    // Predicated region
    $region18: #{tpu_custom_call.1} parent=1 // pred_check
      %p65 = pneg %p64
    $region19: #{tpu_custom_call.1} parent=1 // pred_check_branch
      %67 = sbr.rel (%p65) target = $region21
    $region20: #{tpu_custom_call.1} parent=1 // pred_region
      %68 = vst [vmem:[#allocation7] sm:$0xff] 0.0
    $region21: #{tpu_custom_call.1} parent=1 // pred_fallthru
      _
    %s69 = sadd.s32 0, 0
    %s70 = smul.u32 %s69, 16
    %s71 = sadd.s32 %s70, 16
    %p72 = scmp.le.s32.totalorder %s71, 16
    // Predicated region
    $region22: #{tpu_custom_call.1} parent=1 // pred_check
      %p73 = pneg %p72
    $region23: #{tpu_custom_call.1} parent=1 // pred_check_branch
      %75 = sbr.rel (%p73) target = $region25
    $region24: #{tpu_custom_call.1} parent=1 // pred_region
      %v76 = vld [vmem:[#allocation2] sm:$0xff]
      %v77 = vld [vmem:[#allocation2 + $0x8] sm:$0xff]
      %v78 = vmul.f32 %v76, 0.75
      %v79 = vmul.f32 %v77, 0.75
      %v80 = vld [vmem:[#allocation5] sm:$0xff]
      %v81 = vld [vmem:[#allocation5 + $0x8] sm:$0xff]
      %v82 = vsub.f32 %v78, %v80
      %v83 = vsub.f32 %v79, %v81
      %v84 = vmul.f32 %v82, %v82
      %v85 = vmul.f32 %v83, %v83
      %v86 = vld [vmem:[#allocation7] sm:$0xff]
      %v87 = vadd.f32 %v84, %v85
      %v88 = vadd.f32 %v86, %v87
      %89 = vst [vmem:[#allocation7] sm:$0xff] %v88
    $region25: #{tpu_custom_call.1} parent=1 // pred_fallthru
      _
    %p90 = scmp.lt.s32.totalorder %s70, 16
    %p91 = scmp.gt.s32.totalorder %s71, 16
    %p92 = pnand %p90, %p91
    %p93 = pneg %p92
    // Predicated region
    $region26: #{tpu_custom_call.1} parent=1 // pred_check
      _
    $region27: #{tpu_custom_call.1} parent=1 // pred_check_branch
      %95 = sbr.rel (%p92) target = $region29
    $region28: #{tpu_custom_call.1} parent=1 // pred_region
      %v96 = vld [vmem:[#allocation2] sm:$0xff]
      %v97 = vld [vmem:[#allocation2 + $0x8] sm:$0xff]
      %v98 = vmul.f32 %v96, 0.75
      %v99 = vmul.f32 %v97, 0.75
      %v100 = vld [vmem:[#allocation5] sm:$0xff]
      %v101 = vld [vmem:[#allocation5 + $0x8] sm:$0xff]
      %v102 = vsub.f32 %v98, %v100
      %v103 = vsub.f32 %v99, %v101
      %v104 = vmul.f32 %v102, %v102
      %v105 = vmul.f32 %v103, %v103
      %v106 = vlaneseq
      %v107 = vshrl.u32 %v106, 7
      %v108 = vadd.s32 %v107, 8
      %v109 = vstv %s70
      %v110 = vadd.s32 %v109, %v107
      %v111 = vadd.s32 %v109, %v108
      %vm112 = vcmp.lt.s32.totalorder %v110, 16
      %vm113 = vcmp.lt.s32.totalorder %v111, 16
      %v114 = vsel %vm112, %v104, 0.0
      %v115 = vsel %vm113, %v105, 0.0
      %v116 = vld [vmem:[#allocation7] sm:$0xff]
      %v117 = vadd.f32 %v114, %v115
      %v118 = vadd.f32 %v116, %v117
      %119 = vst [vmem:[#allocation7] sm:$0xff] %v118
    $region29: #{tpu_custom_call.1} parent=1 // pred_fallthru
      _
    // Predicated region
    $region30: #{tpu_custom_call.1} parent=1 // pred_check
      _
    $region31: #{tpu_custom_call.1} parent=1 // pred_check_branch
      %121 = sbr.rel (0) target = $region33
    $region32: #{tpu_custom_call.1} parent=1 // pred_region
      %123 = vsyncadd [#allocation4], 0
      %s125 = sshll.u32 [#allocation7], 4
      %s126 = int_to_ptr.vmem [resolvable:$true] %s125
      %s127 = sshll.u32 %s2, 4
      %s128 = int_to_ptr.hbm [resolvable:$true] %s127
      %130 = dma.vmem_to_hbm [thread:$0]  %s126, 128, %s128, [#allocation4]
    $region33: #{tpu_custom_call.1} parent=1 // pred_fallthru
      _
    // Predicated region
    $region34: #{tpu_custom_call.1} parent=1 // pred_check
      _
    $region35: #{tpu_custom_call.1} parent=1 // pred_check_branch
      %132 = sbr.rel (0) target = $region37
    $region36: #{tpu_custom_call.1} parent=1 // pred_region
      %134 = dma.done [#allocation4], 128
    $region37: #{tpu_custom_call.1} parent=1 // pred_fallthru
      _
    %135 = vsyncpa [#allocation3], 1
    %136 = vsyncpa [#allocation6], 1
    %137 = vsyncpa [#allocation4], 1

</llo_original>
